<compile_context>
chip_gen: v7x
topology: tpu7x:2x2x1
jax: 0.10.0
libtpu: 0.0.40
codegen_flags: <defaults>
</compile_context>

<pallas_src>
import numpy as np
import jax
import jax.numpy as jnp
from jax import lax
from jax.experimental import pallas as pl
from jax.experimental.pallas import tpu as pltpu


TK = 64  # selected voxels (output rows in the transposed layout) per grid step


def roi_gather_kernel(idx_ref, fmri_t_ref, out_t_ref):
    # idx_ref    : SMEM (K_pad,) int32  -- scalar-prefetched ROI indices
    # fmri_t_ref : VMEM (Nv, B)         -- full transposed fmri (resident)
    # out_t_ref  : VMEM (TK, B)         -- this grid step's output tile
    base = pl.program_id(0) * TK

    def copy_one(j, carry):
        row = idx_ref[base + j]
        out_t_ref[pl.ds(j, 1), :] = fmri_t_ref[pl.ds(row, 1), :]
        return carry

    lax.fori_loop(0, TK, copy_one, 0, unroll=True)


def make_roi_extractor(roi):
    """Build the forward fn for a static roi (boolean mask or index array)."""
    roi = np.asarray(roi)
    if roi.dtype == np.bool_:
        idx = np.nonzero(roi)[0].astype(np.int32)
    else:
        idx = roi.astype(np.int32).reshape(-1)
    K = int(idx.shape[0])

    # Pad the (static) index list to a multiple of the tile size; padded slots
    # point at row 0 (always in bounds) and are sliced off after the kernel.
    if K > 0:
        K_pad = ((K + TK - 1) // TK) * TK
        idx_padded_np = np.zeros((K_pad,), dtype=np.int32)
        idx_padded_np[:K] = idx
        idx_padded = jnp.asarray(idx_padded_np)
    else:
        K_pad, idx_padded = 0, None

    def forward(fmri):
        B, Nv = fmri.shape
        if K == 0:
            return fmri[:, :0]            # empty ROI -> empty result
        assert int(idx.max()) < Nv, "roi index out of range"

        # Layout plumbing (cheap, B is tiny): gathered axis -> sublanes.
        fmri_t = fmri.T                   # [Nv, B]

        itemsize = jnp.dtype(fmri.dtype).itemsize
        # Double-buffered resident input + double-buffered output tile + slack.
        vmem_needed = 2 * Nv * B * itemsize + 2 * TK * B * itemsize + (1 << 20)
        vmem_limit = int(min(100 * 2**20, max(32 * 2**20, vmem_needed)))
        # TODO(synk): for large B, add a second "parallel" grid axis over batch
        # tiles instead of keeping the whole [Nv, B] block resident in VMEM.

        out_t = pl.pallas_call(
            roi_gather_kernel,
            out_shape=jax.ShapeDtypeStruct((K_pad, B), fmri.dtype),
            grid_spec=pltpu.PrefetchScalarGridSpec(
                num_scalar_prefetch=1,
                grid=(K_pad // TK,),
                in_specs=[
                    # Full transposed fmri; constant block index -> fetched once.
                    pl.BlockSpec((Nv, B), lambda t, idx: (0, 0)),
                ],
                out_specs=pl.BlockSpec((TK, B), lambda t, idx: (t, 0)),
            ),
            compiler_params=pltpu.CompilerParams(
                dimension_semantics=("parallel",),
                vmem_limit_bytes=vmem_limit,
            ),
            cost_estimate=pl.CostEstimate(
                flops=0,
                transcendentals=0,
                bytes_accessed=int((Nv * B + K_pad * B) * itemsize + K_pad * 4),
            ),
        )(idx_padded, fmri_t)

        return out_t[:K].T                # back to [B, K]

    return forward


if __name__ == "__main__":
    key = jax.random.PRNGKey(0)

    B, Nv = 2, 512
    fmri = jax.random.normal(key, (B, Nv), dtype=jnp.float32)

    # Case 1: boolean ROI mask, every 4th voxel -> K = 128 selected columns.
    roi_mask = np.zeros((Nv,), dtype=bool)
    roi_mask[::4] = True
    extractor = make_roi_extractor(roi_mask)
    out = jax.block_until_ready(extractor(fmri))
    ref = fmri[:, jnp.asarray(np.nonzero(roi_mask)[0])]
    assert out.shape == ref.shape, (out.shape, ref.shape)
    assert out.dtype == ref.dtype, (out.dtype, ref.dtype)
    np.testing.assert_array_equal(np.asarray(out), np.asarray(ref))

    # Case 2: arbitrary (unsorted, non-multiple-of-tile) integer ROI, K=10.
    roi_idx = np.array([5, 3, 511, 0, 7, 128, 129, 130, 42, 255], dtype=np.int32)
    extractor2 = make_roi_extractor(roi_idx)
    out2 = jax.block_until_ready(extractor2(fmri))
    ref2 = fmri[:, jnp.asarray(roi_idx)]
    assert out2.shape == ref2.shape, (out2.shape, ref2.shape)
    np.testing.assert_array_equal(np.asarray(out2), np.asarray(ref2))

    print("KERNEL_OK")
</pallas_src>

<mosaic_0001>
module attributes {stable_mosaic.version = 11 : i64} {
  func.func @roi_gather_kernel(%arg0: i32, %arg1: memref<128xi32, #tpu.memory_space<smem>>, %arg2: memref<512x2xf32, #tpu.memory_space<vmem>>, %arg3: memref<64x2xf32, #tpu.memory_space<vmem>>) attributes {dimension_semantics = [#tpu.dimension_semantics<parallel>], iteration_bounds = array<i64: 2>, scalar_prefetch = 1 : i64, scratch_operands = 0 : i64, tpu.core_type = #tpu.core_type<tc>, window_params = [{pipeline_mode = #tpu.pipeline_mode<synchronous>, transform_indices = @transform_0, window_bounds = array<i64: 512, 2>}, {transform_indices = @transform_1, window_bounds = array<i64: 64, 2>}]} {
    %c64_i32 = arith.constant 64 : i32
    %0 = arith.muli %arg0, %c64_i32 : i32
    %c0_i32 = arith.constant 0 : i32
    %1 = arith.addi %0, %c0_i32 : i32
    %2 = arith.index_cast %1 : i32 to index
    %3 = memref.load %arg1[%2] : memref<128xi32, #tpu.memory_space<smem>>
    %4 = arith.index_cast %3 : i32 to index
    %c0 = arith.constant 0 : index
    %5 = vector.load %arg2[%4, %c0] : memref<512x2xf32, #tpu.memory_space<vmem>>, vector<1x2xf32>
    %6 = arith.index_cast %c0_i32 : i32 to index
    %c0_0 = arith.constant 0 : index
    %7 = vector.load %arg3[%6, %c0_0] : memref<64x2xf32, #tpu.memory_space<vmem>>, vector<1x2xf32>
    tpu.vector_store %arg3[%6, %c0_0], %5 {strides = array<i32>} : memref<64x2xf32, #tpu.memory_space<vmem>>, vector<1x2xf32>,
    %c1_i32 = arith.constant 1 : i32
    %8 = arith.addi %0, %c1_i32 : i32
    %9 = arith.index_cast %8 : i32 to index
    %10 = memref.load %arg1[%9] : memref<128xi32, #tpu.memory_space<smem>>
    %11 = arith.index_cast %10 : i32 to index
    %c0_1 = arith.constant 0 : index
    %12 = vector.load %arg2[%11, %c0_1] : memref<512x2xf32, #tpu.memory_space<vmem>>, vector<1x2xf32>
    %13 = arith.index_cast %c1_i32 : i32 to index
    %c0_2 = arith.constant 0 : index
    %14 = vector.load %arg3[%13, %c0_2] : memref<64x2xf32, #tpu.memory_space<vmem>>, vector<1x2xf32>
    tpu.vector_store %arg3[%13, %c0_2], %12 {strides = array<i32>} : memref<64x2xf32, #tpu.memory_space<vmem>>, vector<1x2xf32>,
    %c2_i32 = arith.constant 2 : i32
    %15 = arith.addi %0, %c2_i32 : i32
    %16 = arith.index_cast %15 : i32 to index
    %17 = memref.load %arg1[%16] : memref<128xi32, #tpu.memory_space<smem>>
    %18 = arith.index_cast %17 : i32 to index
    %c0_3 = arith.constant 0 : index
    %19 = vector.load %arg2[%18, %c0_3] : memref<512x2xf32, #tpu.memory_space<vmem>>, vector<1x2xf32>
    %20 = arith.index_cast %c2_i32 : i32 to index
    %c0_4 = arith.constant 0 : index
    %21 = vector.load %arg3[%20, %c0_4] : memref<64x2xf32, #tpu.memory_space<vmem>>, vector<1x2xf32>
    tpu.vector_store %arg3[%20, %c0_4], %19 {strides = array<i32>} : memref<64x2xf32, #tpu.memory_space<vmem>>, vector<1x2xf32>,
    %c3_i32 = arith.constant 3 : i32
    %22 = arith.addi %0, %c3_i32 : i32
    %23 = arith.index_cast %22 : i32 to index
    %24 = memref.load %arg1[%23] : memref<128xi32, #tpu.memory_space<smem>>
    %25 = arith.index_cast %24 : i32 to index
    %c0_5 = arith.constant 0 : index
    %26 = vector.load %arg2[%25, %c0_5] : memref<512x2xf32, #tpu.memory_space<vmem>>, vector<1x2xf32>
    %27 = arith.index_cast %c3_i32 : i32 to index
    %c0_6 = arith.constant 0 : index
    %28 = vector.load %arg3[%27, %c0_6] : memref<64x2xf32, #tpu.memory_space<vmem>>, vector<1x2xf32>
    tpu.vector_store %arg3[%27, %c0_6], %26 {strides = array<i32>} : memref<64x2xf32, #tpu.memory_space<vmem>>, vector<1x2xf32>,
    %c4_i32 = arith.constant 4 : i32
    %29 = arith.addi %0, %c4_i32 : i32
    %30 = arith.index_cast %29 : i32 to index
    %31 = memref.load %arg1[%30] : memref<128xi32, #tpu.memory_space<smem>>
    %32 = arith.index_cast %31 : i32 to index
    %c0_7 = arith.constant 0 : index
    %33 = vector.load %arg2[%32, %c0_7] : memref<512x2xf32, #tpu.memory_space<vmem>>, vector<1x2xf32>
    %34 = arith.index_cast %c4_i32 : i32 to index
    %c0_8 = arith.constant 0 : index
    %35 = vector.load %arg3[%34, %c0_8] : memref<64x2xf32, #tpu.memory_space<vmem>>, vector<1x2xf32>
    tpu.vector_store %arg3[%34, %c0_8], %33 {strides = array<i32>} : memref<64x2xf32, #tpu.memory_space<vmem>>, vector<1x2xf32>,
    %c5_i32 = arith.constant 5 : i32
    %36 = arith.addi %0, %c5_i32 : i32
    %37 = arith.index_cast %36 : i32 to index
    %38 = memref.load %arg1[%37] : memref<128xi32, #tpu.memory_space<smem>>
    %39 = arith.index_cast %38 : i32 to index
    %c0_9 = arith.constant 0 : index
    %40 = vector.load %arg2[%39, %c0_9] : memref<512x2xf32, #tpu.memory_space<vmem>>, vector<1x2xf32>
    %41 = arith.index_cast %c5_i32 : i32 to index
    %c0_10 = arith.constant 0 : index
    %42 = vector.load %arg3[%41, %c0_10] : memref<64x2xf32, #tpu.memory_space<vmem>>, vector<1x2xf32>
    tpu.vector_store %arg3[%41, %c0_10], %40 {strides = array<i32>} : memref<64x2xf32, #tpu.memory_space<vmem>>, vector<1x2xf32>,
    %c6_i32 = arith.constant 6 : i32
    %43 = arith.addi %0, %c6_i32 : i32
    %44 = arith.index_cast %43 : i32 to index
    %45 = memref.load %arg1[%44] : memref<128xi32, #tpu.memory_space<smem>>
    %46 = arith.index_cast %45 : i32 to index
    %c0_11 = arith.constant 0 : index
    %47 = vector.load %arg2[%46, %c0_11] : memref<512x2xf32, #tpu.memory_space<vmem>>, vector<1x2xf32>
    %48 = arith.index_cast %c6_i32 : i32 to index
    %c0_12 = arith.constant 0 : index
    %49 = vector.load %arg3[%48, %c0_12] : memref<64x2xf32, #tpu.memory_space<vmem>>, vector<1x2xf32>
    tpu.vector_store %arg3[%48, %c0_12], %47 {strides = array<i32>} : memref<64x2xf32, #tpu.memory_space<vmem>>, vector<1x2xf32>,
    %c7_i32 = arith.constant 7 : i32
    %50 = arith.addi %0, %c7_i32 : i32
    %51 = arith.index_cast %50 : i32 to index
    %52 = memref.load %arg1[%51] : memref<128xi32, #tpu.memory_space<smem>>
    %53 = arith.index_cast %52 : i32 to index
    %c0_13 = arith.constant 0 : index
    %54 = vector.load %arg2[%53, %c0_13] : memref<512x2xf32, #tpu.memory_space<vmem>>, vector<1x2xf32>
    %55 = arith.index_cast %c7_i32 : i32 to index
    %c0_14 = arith.constant 0 : index
    %56 = vector.load %arg3[%55, %c0_14] : memref<64x2xf32, #tpu.memory_space<vmem>>, vector<1x2xf32>
    tpu.vector_store %arg3[%55, %c0_14], %54 {strides = array<i32>} : memref<64x2xf32, #tpu.memory_space<vmem>>, vector<1x2xf32>,
    %c8_i32 = arith.constant 8 : i32
    %57 = arith.addi %0, %c8_i32 : i32
    %58 = arith.index_cast %57 : i32 to index
    %59 = memref.load %arg1[%58] : memref<128xi32, #tpu.memory_space<smem>>
    %60 = arith.index_cast %59 : i32 to index
    %c0_15 = arith.constant 0 : index
    %61 = vector.load %arg2[%60, %c0_15] : memref<512x2xf32, #tpu.memory_space<vmem>>, vector<1x2xf32>
    %62 = arith.index_cast %c8_i32 : i32 to index
    %c0_16 = arith.constant 0 : index
    %63 = vector.load %arg3[%62, %c0_16] : memref<64x2xf32, #tpu.memory_space<vmem>>, vector<1x2xf32>
    tpu.vector_store %arg3[%62, %c0_16], %61 {strides = array<i32>} : memref<64x2xf32, #tpu.memory_space<vmem>>, vector<1x2xf32>,
    %c9_i32 = arith.constant 9 : i32
    %64 = arith.addi %0, %c9_i32 : i32
    %65 = arith.index_cast %64 : i32 to index
    %66 = memref.load %arg1[%65] : memref<128xi32, #tpu.memory_space<smem>>
    %67 = arith.index_cast %66 : i32 to index
    %c0_17 = arith.constant 0 : index
    %68 = vector.load %arg2[%67, %c0_17] : memref<512x2xf32, #tpu.memory_space<vmem>>, vector<1x2xf32>
    %69 = arith.index_cast %c9_i32 : i32 to index
    %c0_18 = arith.constant 0 : index
    %70 = vector.load %arg3[%69, %c0_18] : memref<64x2xf32, #tpu.memory_space<vmem>>, vector<1x2xf32>
    tpu.vector_store %arg3[%69, %c0_18], %68 {strides = array<i32>} : memref<64x2xf32, #tpu.memory_space<vmem>>, vector<1x2xf32>,
    %c10_i32 = arith.constant 10 : i32
    %71 = arith.addi %0, %c10_i32 : i32
    %72 = arith.index_cast %71 : i32 to index
    %73 = memref.load %arg1[%72] : memref<128xi32, #tpu.memory_space<smem>>
    %74 = arith.index_cast %73 : i32 to index
    %c0_19 = arith.constant 0 : index
    %75 = vector.load %arg2[%74, %c0_19] : memref<512x2xf32, #tpu.memory_space<vmem>>, vector<1x2xf32>
    %76 = arith.index_cast %c10_i32 : i32 to index
    %c0_20 = arith.constant 0 : index
    %77 = vector.load %arg3[%76, %c0_20] : memref<64x2xf32, #tpu.memory_space<vmem>>, vector<1x2xf32>
    tpu.vector_store %arg3[%76, %c0_20], %75 {strides = array<i32>} : memref<64x2xf32, #tpu.memory_space<vmem>>, vector<1x2xf32>,
    %c11_i32 = arith.constant 11 : i32
    %78 = arith.addi %0, %c11_i32 : i32
    %79 = arith.index_cast %78 : i32 to index
    %80 = memref.load %arg1[%79] : memref<128xi32, #tpu.memory_space<smem>>
    %81 = arith.index_cast %80 : i32 to index
    %c0_21 = arith.constant 0 : index
    %82 = vector.load %arg2[%81, %c0_21] : memref<512x2xf32, #tpu.memory_space<vmem>>, vector<1x2xf32>
    %83 = arith.index_cast %c11_i32 : i32 to index
    %c0_22 = arith.constant 0 : index
    %84 = vector.load %arg3[%83, %c0_22] : memref<64x2xf32, #tpu.memory_space<vmem>>, vector<1x2xf32>
    tpu.vector_store %arg3[%83, %c0_22], %82 {strides = array<i32>} : memref<64x2xf32, #tpu.memory_space<vmem>>, vector<1x2xf32>,
    %c12_i32 = arith.constant 12 : i32
    %85 = arith.addi %0, %c12_i32 : i32
    %86 = arith.index_cast %85 : i32 to index
    %87 = memref.load %arg1[%86] : memref<128xi32, #tpu.memory_space<smem>>
    %88 = arith.index_cast %87 : i32 to index
    %c0_23 = arith.constant 0 : index
    %89 = vector.load %arg2[%88, %c0_23] : memref<512x2xf32, #tpu.memory_space<vmem>>, vector<1x2xf32>
    %90 = arith.index_cast %c12_i32 : i32 to index
    %c0_24 = arith.constant 0 : index
    %91 = vector.load %arg3[%90, %c0_24] : memref<64x2xf32, #tpu.memory_space<vmem>>, vector<1x2xf32>
    tpu.vector_store %arg3[%90, %c0_24], %89 {strides = array<i32>} : memref<64x2xf32, #tpu.memory_space<vmem>>, vector<1x2xf32>,
    %c13_i32 = arith.constant 13 : i32
    %92 = arith.addi %0, %c13_i32 : i32
    %93 = arith.index_cast %92 : i32 to index
    %94 = memref.load %arg1[%93] : memref<128xi32, #tpu.memory_space<smem>>
    %95 = arith.index_cast %94 : i32 to index
    %c0_25 = arith.constant 0 : index
    %96 = vector.load %arg2[%95, %c0_25] : memref<512x2xf32, #tpu.memory_space<vmem>>, vector<1x2xf32>
    %97 = arith.index_cast %c13_i32 : i32 to index
    %c0_26 = arith.constant 0 : index
    %98 = vector.load %arg3[%97, %c0_26] : memref<64x2xf32, #tpu.memory_space<vmem>>, vector<1x2xf32>
    tpu.vector_store %arg3[%97, %c0_26], %96 {strides = array<i32>} : memref<64x2xf32, #tpu.memory_space<vmem>>, vector<1x2xf32>,
    %c14_i32 = arith.constant 14 : i32
    %99 = arith.addi %0, %c14_i32 : i32
    %100 = arith.index_cast %99 : i32 to index
    %101 = memref.load %arg1[%100] : memref<128xi32, #tpu.memory_space<smem>>
    %102 = arith.index_cast %101 : i32 to index
    %c0_27 = arith.constant 0 : index
    %103 = vector.load %arg2[%102, %c0_27] : memref<512x2xf32, #tpu.memory_space<vmem>>, vector<1x2xf32>
    %104 = arith.index_cast %c14_i32 : i32 to index
    %c0_28 = arith.constant 0 : index
    %105 = vector.load %arg3[%104, %c0_28] : memref<64x2xf32, #tpu.memory_space<vmem>>, vector<1x2xf32>
    tpu.vector_store %arg3[%104, %c0_28], %103 {strides = array<i32>} : memref<64x2xf32, #tpu.memory_space<vmem>>, vector<1x2xf32>,
    %c15_i32 = arith.constant 15 : i32
    %106 = arith.addi %0, %c15_i32 : i32
    %107 = arith.index_cast %106 : i32 to index
    %108 = memref.load %arg1[%107] : memref<128xi32, #tpu.memory_space<smem>>
    %109 = arith.index_cast %108 : i32 to index
    %c0_29 = arith.constant 0 : index
    %110 = vector.load %arg2[%109, %c0_29] : memref<512x2xf32, #tpu.memory_space<vmem>>, vector<1x2xf32>
    %111 = arith.index_cast %c15_i32 : i32 to index
    %c0_30 = arith.constant 0 : index
    %112 = vector.load %arg3[%111, %c0_30] : memref<64x2xf32, #tpu.memory_space<vmem>>, vector<1x2xf32>
    tpu.vector_store %arg3[%111, %c0_30], %110 {strides = array<i32>} : memref<64x2xf32, #tpu.memory_space<vmem>>, vector<1x2xf32>,
    %c16_i32 = arith.constant 16 : i32
    %113 = arith.addi %0, %c16_i32 : i32
    %114 = arith.index_cast %113 : i32 to index
    %115 = memref.load %arg1[%114] : memref<128xi32, #tpu.memory_space<smem>>
    %116 = arith.index_cast %115 : i32 to index
    %c0_31 = arith.constant 0 : index
    %117 = vector.load %arg2[%116, %c0_31] : memref<512x2xf32, #tpu.memory_space<vmem>>, vector<1x2xf32>
    %118 = arith.index_cast %c16_i32 : i32 to index
    %c0_32 = arith.constant 0 : index
    %119 = vector.load %arg3[%118, %c0_32] : memref<64x2xf32, #tpu.memory_space<vmem>>, vector<1x2xf32>
    tpu.vector_store %arg3[%118, %c0_32], %117 {strides = array<i32>} : memref<64x2xf32, #tpu.memory_space<vmem>>, vector<1x2xf32>,
    %c17_i32 = arith.constant 17 : i32
    %120 = arith.addi %0, %c17_i32 : i32
    %121 = arith.index_cast %120 : i32 to index
    %122 = memref.load %arg1[%121] : memref<128xi32, #tpu.memory_space<smem>>
    %123 = arith.index_cast %122 : i32 to index
    %c0_33 = arith.constant 0 : index
    %124 = vector.load %arg2[%123, %c0_33] : memref<512x2xf32, #tpu.memory_space<vmem>>, vector<1x2xf32>
    %125 = arith.index_cast %c17_i32 : i32 to index
    %c0_34 = arith.constant 0 : index
    %126 = vector.load %arg3[%125, %c0_34] : memref<64x2xf32, #tpu.memory_space<vmem>>, vector<1x2xf32>
    tpu.vector_store %arg3[%125, %c0_34], %124 {strides = array<i32>} : memref<64x2xf32, #tpu.memory_space<vmem>>, vector<1x2xf32>,
    %c18_i32 = arith.constant 18 : i32
    %127 = arith.addi %0, %c18_i32 : i32
    %128 = arith.index_cast %127 : i32 to index
    %129 = memref.load %arg1[%128] : memref<128xi32, #tpu.memory_space<smem>>
    %130 = arith.index_cast %129 : i32 to index
    %c0_35 = arith.constant 0 : index
    %131 = vector.load %arg2[%130, %c0_35] : memref<512x2xf32, #tpu.memory_space<vmem>>, vector<1x2xf32>
    %132 = arith.index_cast %c18_i32 : i32 to index
    %c0_36 = arith.constant 0 : index
    %133 = vector.load %arg3[%132, %c0_36] : memref<64x2xf32, #tpu.memory_space<vmem>>, vector<1x2xf32>
    tpu.vector_store %arg3[%132, %c0_36], %131 {strides = array<i32>} : memref<64x2xf32, #tpu.memory_space<vmem>>, vector<1x2xf32>,
    %c19_i32 = arith.constant 19 : i32
    %134 = arith.addi %0, %c19_i32 : i32
    %135 = arith.index_cast %134 : i32 to index
    %136 = memref.load %arg1[%135] : memref<128xi32, #tpu.memory_space<smem>>
    %137 = arith.index_cast %136 : i32 to index
    %c0_37 = arith.constant 0 : index
    %138 = vector.load %arg2[%137, %c0_37] : memref<512x2xf32, #tpu.memory_space<vmem>>, vector<1x2xf32>
    %139 = arith.index_cast %c19_i32 : i32 to index
    %c0_38 = arith.constant 0 : index
    %140 = vector.load %arg3[%139, %c0_38] : memref<64x2xf32, #tpu.memory_space<vmem>>, vector<1x2xf32>
    tpu.vector_store %arg3[%139, %c0_38], %138 {strides = array<i32>} : memref<64x2xf32, #tpu.memory_space<vmem>>, vector<1x2xf32>,
    %c20_i32 = arith.constant 20 : i32
    %141 = arith.addi %0, %c20_i32 : i32
    %142 = arith.index_cast %141 : i32 to index
    %143 = memref.load %arg1[%142] : memref<128xi32, #tpu.memory_space<smem>>
    %144 = arith.index_cast %143 : i32 to index
    %c0_39 = arith.constant 0 : index
    %145 = vector.load %arg2[%144, %c0_39] : memref<512x2xf32, #tpu.memory_space<vmem>>, vector<1x2xf32>
    %146 = arith.index_cast %c20_i32 : i32 to index
    %c0_40 = arith.constant 0 : index
    %147 = vector.load %arg3[%146, %c0_40] : memref<64x2xf32, #tpu.memory_space<vmem>>, vector<1x2xf32>
    tpu.vector_store %arg3[%146, %c0_40], %145 {strides = array<i32>} : memref<64x2xf32, #tpu.memory_space<vmem>>, vector<1x2xf32>,
    %c21_i32 = arith.constant 21 : i32
    %148 = arith.addi %0, %c21_i32 : i32
    %149 = arith.index_cast %148 : i32 to index
    %150 = memref.load %arg1[%149] : memref<128xi32, #tpu.memory_space<smem>>
    %151 = arith.index_cast %150 : i32 to index
    %c0_41 = arith.constant 0 : index
    %152 = vector.load %arg2[%151, %c0_41] : memref<512x2xf32, #tpu.memory_space<vmem>>, vector<1x2xf32>
    %153 = arith.index_cast %c21_i32 : i32 to index
    %c0_42 = arith.constant 0 : index
    %154 = vector.load %arg3[%153, %c0_42] : memref<64x2xf32, #tpu.memory_space<vmem>>, vector<1x2xf32>
    tpu.vector_store %arg3[%153, %c0_42], %152 {strides = array<i32>} : memref<64x2xf32, #tpu.memory_space<vmem>>, vector<1x2xf32>,
    %c22_i32 = arith.constant 22 : i32
    %155 = arith.addi %0, %c22_i32 : i32
    %156 = arith.index_cast %155 : i32 to index
    %157 = memref.load %arg1[%156] : memref<128xi32, #tpu.memory_space<smem>>
    %158 = arith.index_cast %157 : i32 to index
    %c0_43 = arith.constant 0 : index
    %159 = vector.load %arg2[%158, %c0_43] : memref<512x2xf32, #tpu.memory_space<vmem>>, vector<1x2xf32>
    %160 = arith.index_cast %c22_i32 : i32 to index
    %c0_44 = arith.constant 0 : index
    %161 = vector.load %arg3[%160, %c0_44] : memref<64x2xf32, #tpu.memory_space<vmem>>, vector<1x2xf32>
    tpu.vector_store %arg3[%160, %c0_44], %159 {strides = array<i32>} : memref<64x2xf32, #tpu.memory_space<vmem>>, vector<1x2xf32>,
    %c23_i32 = arith.constant 23 : i32
    %162 = arith.addi %0, %c23_i32 : i32
    %163 = arith.index_cast %162 : i32 to index
    %164 = memref.load %arg1[%163] : memref<128xi32, #tpu.memory_space<smem>>
    %165 = arith.index_cast %164 : i32 to index
    %c0_45 = arith.constant 0 : index
    %166 = vector.load %arg2[%165, %c0_45] : memref<512x2xf32, #tpu.memory_space<vmem>>, vector<1x2xf32>
    %167 = arith.index_cast %c23_i32 : i32 to index
    %c0_46 = arith.constant 0 : index
    %168 = vector.load %arg3[%167, %c0_46] : memref<64x2xf32, #tpu.memory_space<vmem>>, vector<1x2xf32>
    tpu.vector_store %arg3[%167, %c0_46], %166 {strides = array<i32>} : memref<64x2xf32, #tpu.memory_space<vmem>>, vector<1x2xf32>,
    %c24_i32 = arith.constant 24 : i32
    %169 = arith.addi %0, %c24_i32 : i32
    %170 = arith.index_cast %169 : i32 to index
    %171 = memref.load %arg1[%170] : memref<128xi32, #tpu.memory_space<smem>>
    %172 = arith.index_cast %171 : i32 to index
    %c0_47 = arith.constant 0 : index
    %173 = vector.load %arg2[%172, %c0_47] : memref<512x2xf32, #tpu.memory_space<vmem>>, vector<1x2xf32>
    %174 = arith.index_cast %c24_i32 : i32 to index
    %c0_48 = arith.constant 0 : index
    %175 = vector.load %arg3[%174, %c0_48] : memref<64x2xf32, #tpu.memory_space<vmem>>, vector<1x2xf32>
    tpu.vector_store %arg3[%174, %c0_48], %173 {strides = array<i32>} : memref<64x2xf32, #tpu.memory_space<vmem>>, vector<1x2xf32>,
    %c25_i32 = arith.constant 25 : i32
    %176 = arith.addi %0, %c25_i32 : i32
    %177 = arith.index_cast %176 : i32 to index
    %178 = memref.load %arg1[%177] : memref<128xi32, #tpu.memory_space<smem>>
    %179 = arith.index_cast %178 : i32 to index
    %c0_49 = arith.constant 0 : index
    %180 = vector.load %arg2[%179, %c0_49] : memref<512x2xf32, #tpu.memory_space<vmem>>, vector<1x2xf32>
    %181 = arith.index_cast %c25_i32 : i32 to index
    %c0_50 = arith.constant 0 : index
    %182 = vector.load %arg3[%181, %c0_50] : memref<64x2xf32, #tpu.memory_space<vmem>>, vector<1x2xf32>
    tpu.vector_store %arg3[%181, %c0_50], %180 {strides = array<i32>} : memref<64x2xf32, #tpu.memory_space<vmem>>, vector<1x2xf32>,
    %c26_i32 = arith.constant 26 : i32
    %183 = arith.addi %0, %c26_i32 : i32
    %184 = arith.index_cast %183 : i32 to index
    %185 = memref.load %arg1[%184] : memref<128xi32, #tpu.memory_space<smem>>
    %186 = arith.index_cast %185 : i32 to index
    %c0_51 = arith.constant 0 : index
    %187 = vector.load %arg2[%186, %c0_51] : memref<512x2xf32, #tpu.memory_space<vmem>>, vector<1x2xf32>
    %188 = arith.index_cast %c26_i32 : i32 to index
    %c0_52 = arith.constant 0 : index
    %189 = vector.load %arg3[%188, %c0_52] : memref<64x2xf32, #tpu.memory_space<vmem>>, vector<1x2xf32>
    tpu.vector_store %arg3[%188, %c0_52], %187 {strides = array<i32>} : memref<64x2xf32, #tpu.memory_space<vmem>>, vector<1x2xf32>,
    %c27_i32 = arith.constant 27 : i32
    %190 = arith.addi %0, %c27_i32 : i32
    %191 = arith.index_cast %190 : i32 to index
    %192 = memref.load %arg1[%191] : memref<128xi32, #tpu.memory_space<smem>>
    %193 = arith.index_cast %192 : i32 to index
    %c0_53 = arith.constant 0 : index
    %194 = vector.load %arg2[%193, %c0_53] : memref<512x2xf32, #tpu.memory_space<vmem>>, vector<1x2xf32>
    %195 = arith.index_cast %c27_i32 : i32 to index
    %c0_54 = arith.constant 0 : index
    %196 = vector.load %arg3[%195, %c0_54] : memref<64x2xf32, #tpu.memory_space<vmem>>, vector<1x2xf32>
    tpu.vector_store %arg3[%195, %c0_54], %194 {strides = array<i32>} : memref<64x2xf32, #tpu.memory_space<vmem>>, vector<1x2xf32>,
    %c28_i32 = arith.constant 28 : i32
    %197 = arith.addi %0, %c28_i32 : i32
    %198 = arith.index_cast %197 : i32 to index
    %199 = memref.load %arg1[%198] : memref<128xi32, #tpu.memory_space<smem>>
    %200 = arith.index_cast %199 : i32 to index
    %c0_55 = arith.constant 0 : index
    %201 = vector.load %arg2[%200, %c0_55] : memref<512x2xf32, #tpu.memory_space<vmem>>, vector<1x2xf32>
    %202 = arith.index_cast %c28_i32 : i32 to index
    %c0_56 = arith.constant 0 : index
    %203 = vector.load %arg3[%202, %c0_56] : memref<64x2xf32, #tpu.memory_space<vmem>>, vector<1x2xf32>
    tpu.vector_store %arg3[%202, %c0_56], %201 {strides = array<i32>} : memref<64x2xf32, #tpu.memory_space<vmem>>, vector<1x2xf32>,
    %c29_i32 = arith.constant 29 : i32
    %204 = arith.addi %0, %c29_i32 : i32
    %205 = arith.index_cast %204 : i32 to index
    %206 = memref.load %arg1[%205] : memref<128xi32, #tpu.memory_space<smem>>
    %207 = arith.index_cast %206 : i32 to index
    %c0_57 = arith.constant 0 : index
    %208 = vector.load %arg2[%207, %c0_57] : memref<512x2xf32, #tpu.memory_space<vmem>>, vector<1x2xf32>
    %209 = arith.index_cast %c29_i32 : i32 to index
    %c0_58 = arith.constant 0 : index
    %210 = vector.load %arg3[%209, %c0_58] : memref<64x2xf32, #tpu.memory_space<vmem>>, vector<1x2xf32>
    tpu.vector_store %arg3[%209, %c0_58], %208 {strides = array<i32>} : memref<64x2xf32, #tpu.memory_space<vmem>>, vector<1x2xf32>,
    %c30_i32 = arith.constant 30 : i32
    %211 = arith.addi %0, %c30_i32 : i32
    %212 = arith.index_cast %211 : i32 to index
    %213 = memref.load %arg1[%212] : memref<128xi32, #tpu.memory_space<smem>>
    %214 = arith.index_cast %213 : i32 to index
    %c0_59 = arith.constant 0 : index
    %215 = vector.load %arg2[%214, %c0_59] : memref<512x2xf32, #tpu.memory_space<vmem>>, vector<1x2xf32>
    %216 = arith.index_cast %c30_i32 : i32 to index
    %c0_60 = arith.constant 0 : index
    %217 = vector.load %arg3[%216, %c0_60] : memref<64x2xf32, #tpu.memory_space<vmem>>, vector<1x2xf32>
    tpu.vector_store %arg3[%216, %c0_60], %215 {strides = array<i32>} : memref<64x2xf32, #tpu.memory_space<vmem>>, vector<1x2xf32>,
    %c31_i32 = arith.constant 31 : i32
    %218 = arith.addi %0, %c31_i32 : i32
    %219 = arith.index_cast %218 : i32 to index
    %220 = memref.load %arg1[%219] : memref<128xi32, #tpu.memory_space<smem>>
    %221 = arith.index_cast %220 : i32 to index
    %c0_61 = arith.constant 0 : index
    %222 = vector.load %arg2[%221, %c0_61] : memref<512x2xf32, #tpu.memory_space<vmem>>, vector<1x2xf32>
    %223 = arith.index_cast %c31_i32 : i32 to index
    %c0_62 = arith.constant 0 : index
    %224 = vector.load %arg3[%223, %c0_62] : memref<64x2xf32, #tpu.memory_space<vmem>>, vector<1x2xf32>
    tpu.vector_store %arg3[%223, %c0_62], %222 {strides = array<i32>} : memref<64x2xf32, #tpu.memory_space<vmem>>, vector<1x2xf32>,
    %c32_i32 = arith.constant 32 : i32
    %225 = arith.addi %0, %c32_i32 : i32
    %226 = arith.index_cast %225 : i32 to index
    %227 = memref.load %arg1[%226] : memref<128xi32, #tpu.memory_space<smem>>
    %228 = arith.index_cast %227 : i32 to index
    %c0_63 = arith.constant 0 : index
    %229 = vector.load %arg2[%228, %c0_63] : memref<512x2xf32, #tpu.memory_space<vmem>>, vector<1x2xf32>
    %230 = arith.index_cast %c32_i32 : i32 to index
    %c0_64 = arith.constant 0 : index
    %231 = vector.load %arg3[%230, %c0_64] : memref<64x2xf32, #tpu.memory_space<vmem>>, vector<1x2xf32>
    tpu.vector_store %arg3[%230, %c0_64], %229 {strides = array<i32>} : memref<64x2xf32, #tpu.memory_space<vmem>>, vector<1x2xf32>,
    %c33_i32 = arith.constant 33 : i32
    %232 = arith.addi %0, %c33_i32 : i32
    %233 = arith.index_cast %232 : i32 to index
    %234 = memref.load %arg1[%233] : memref<128xi32, #tpu.memory_space<smem>>
    %235 = arith.index_cast %234 : i32 to index
    %c0_65 = arith.constant 0 : index
    %236 = vector.load %arg2[%235, %c0_65] : memref<512x2xf32, #tpu.memory_space<vmem>>, vector<1x2xf32>
    %237 = arith.index_cast %c33_i32 : i32 to index
    %c0_66 = arith.constant 0 : index
    %238 = vector.load %arg3[%237, %c0_66] : memref<64x2xf32, #tpu.memory_space<vmem>>, vector<1x2xf32>
    tpu.vector_store %arg3[%237, %c0_66], %236 {strides = array<i32>} : memref<64x2xf32, #tpu.memory_space<vmem>>, vector<1x2xf32>,
    %c34_i32 = arith.constant 34 : i32
    %239 = arith.addi %0, %c34_i32 : i32
    %240 = arith.index_cast %239 : i32 to index
    %241 = memref.load %arg1[%240] : memref<128xi32, #tpu.memory_space<smem>>
    %242 = arith.index_cast %241 : i32 to index
    %c0_67 = arith.constant 0 : index
    %243 = vector.load %arg2[%242, %c0_67] : memref<512x2xf32, #tpu.memory_space<vmem>>, vector<1x2xf32>
    %244 = arith.index_cast %c34_i32 : i32 to index
    %c0_68 = arith.constant 0 : index
    %245 = vector.load %arg3[%244, %c0_68] : memref<64x2xf32, #tpu.memory_space<vmem>>, vector<1x2xf32>
    tpu.vector_store %arg3[%244, %c0_68], %243 {strides = array<i32>} : memref<64x2xf32, #tpu.memory_space<vmem>>, vector<1x2xf32>,
    %c35_i32 = arith.constant 35 : i32
    %246 = arith.addi %0, %c35_i32 : i32
    %247 = arith.index_cast %246 : i32 to index
    %248 = memref.load %arg1[%247] : memref<128xi32, #tpu.memory_space<smem>>
    %249 = arith.index_cast %248 : i32 to index
    %c0_69 = arith.constant 0 : index
    %250 = vector.load %arg2[%249, %c0_69] : memref<512x2xf32, #tpu.memory_space<vmem>>, vector<1x2xf32>
    %251 = arith.index_cast %c35_i32 : i32 to index
    %c0_70 = arith.constant 0 : index
    %252 = vector.load %arg3[%251, %c0_70] : memref<64x2xf32, #tpu.memory_space<vmem>>, vector<1x2xf32>
    tpu.vector_store %arg3[%251, %c0_70], %250 {strides = array<i32>} : memref<64x2xf32, #tpu.memory_space<vmem>>, vector<1x2xf32>,
    %c36_i32 = arith.constant 36 : i32
    %253 = arith.addi %0, %c36_i32 : i32
    %254 = arith.index_cast %253 : i32 to index
    %255 = memref.load %arg1[%254] : memref<128xi32, #tpu.memory_space<smem>>
    %256 = arith.index_cast %255 : i32 to index
    %c0_71 = arith.constant 0 : index
    %257 = vector.load %arg2[%256, %c0_71] : memref<512x2xf32, #tpu.memory_space<vmem>>, vector<1x2xf32>
    %258 = arith.index_cast %c36_i32 : i32 to index
    %c0_72 = arith.constant 0 : index
    %259 = vector.load %arg3[%258, %c0_72] : memref<64x2xf32, #tpu.memory_space<vmem>>, vector<1x2xf32>
    tpu.vector_store %arg3[%258, %c0_72], %257 {strides = array<i32>} : memref<64x2xf32, #tpu.memory_space<vmem>>, vector<1x2xf32>,
    %c37_i32 = arith.constant 37 : i32
    %260 = arith.addi %0, %c37_i32 : i32
    %261 = arith.index_cast %260 : i32 to index
    %262 = memref.load %arg1[%261] : memref<128xi32, #tpu.memory_space<smem>>
    %263 = arith.index_cast %262 : i32 to index
    %c0_73 = arith.constant 0 : index
    %264 = vector.load %arg2[%263, %c0_73] : memref<512x2xf32, #tpu.memory_space<vmem>>, vector<1x2xf32>
    %265 = arith.index_cast %c37_i32 : i32 to index
    %c0_74 = arith.constant 0 : index
    %266 = vector.load %arg3[%265, %c0_74] : memref<64x2xf32, #tpu.memory_space<vmem>>, vector<1x2xf32>
    tpu.vector_store %arg3[%265, %c0_74], %264 {strides = array<i32>} : memref<64x2xf32, #tpu.memory_space<vmem>>, vector<1x2xf32>,
    %c38_i32 = arith.constant 38 : i32
    %267 = arith.addi %0, %c38_i32 : i32
    %268 = arith.index_cast %267 : i32 to index
    %269 = memref.load %arg1[%268] : memref<128xi32, #tpu.memory_space<smem>>
    %270 = arith.index_cast %269 : i32 to index
    %c0_75 = arith.constant 0 : index
    %271 = vector.load %arg2[%270, %c0_75] : memref<512x2xf32, #tpu.memory_space<vmem>>, vector<1x2xf32>
    %272 = arith.index_cast %c38_i32 : i32 to index
    %c0_76 = arith.constant 0 : index
    %273 = vector.load %arg3[%272, %c0_76] : memref<64x2xf32, #tpu.memory_space<vmem>>, vector<1x2xf32>
    tpu.vector_store %arg3[%272, %c0_76], %271 {strides = array<i32>} : memref<64x2xf32, #tpu.memory_space<vmem>>, vector<1x2xf32>,
    %c39_i32 = arith.constant 39 : i32
    %274 = arith.addi %0, %c39_i32 : i32
    %275 = arith.index_cast %274 : i32 to index
    %276 = memref.load %arg1[%275] : memref<128xi32, #tpu.memory_space<smem>>
    %277 = arith.index_cast %276 : i32 to index
    %c0_77 = arith.constant 0 : index
    %278 = vector.load %arg2[%277, %c0_77] : memref<512x2xf32, #tpu.memory_space<vmem>>, vector<1x2xf32>
    %279 = arith.index_cast %c39_i32 : i32 to index
    %c0_78 = arith.constant 0 : index
    %280 = vector.load %arg3[%279, %c0_78] : memref<64x2xf32, #tpu.memory_space<vmem>>, vector<1x2xf32>
    tpu.vector_store %arg3[%279, %c0_78], %278 {strides = array<i32>} : memref<64x2xf32, #tpu.memory_space<vmem>>, vector<1x2xf32>,
    %c40_i32 = arith.constant 40 : i32
    %281 = arith.addi %0, %c40_i32 : i32
    %282 = arith.index_cast %281 : i32 to index
    %283 = memref.load %arg1[%282] : memref<128xi32, #tpu.memory_space<smem>>
    %284 = arith.index_cast %283 : i32 to index
    %c0_79 = arith.constant 0 : index
    %285 = vector.load %arg2[%284, %c0_79] : memref<512x2xf32, #tpu.memory_space<vmem>>, vector<1x2xf32>
    %286 = arith.index_cast %c40_i32 : i32 to index
    %c0_80 = arith.constant 0 : index
    %287 = vector.load %arg3[%286, %c0_80] : memref<64x2xf32, #tpu.memory_space<vmem>>, vector<1x2xf32>
    tpu.vector_store %arg3[%286, %c0_80], %285 {strides = array<i32>} : memref<64x2xf32, #tpu.memory_space<vmem>>, vector<1x2xf32>,
    %c41_i32 = arith.constant 41 : i32
    %288 = arith.addi %0, %c41_i32 : i32
    %289 = arith.index_cast %288 : i32 to index
    %290 = memref.load %arg1[%289] : memref<128xi32, #tpu.memory_space<smem>>
    %291 = arith.index_cast %290 : i32 to index
    %c0_81 = arith.constant 0 : index
    %292 = vector.load %arg2[%291, %c0_81] : memref<512x2xf32, #tpu.memory_space<vmem>>, vector<1x2xf32>
    %293 = arith.index_cast %c41_i32 : i32 to index
    %c0_82 = arith.constant 0 : index
    %294 = vector.load %arg3[%293, %c0_82] : memref<64x2xf32, #tpu.memory_space<vmem>>, vector<1x2xf32>
    tpu.vector_store %arg3[%293, %c0_82], %292 {strides = array<i32>} : memref<64x2xf32, #tpu.memory_space<vmem>>, vector<1x2xf32>,
    %c42_i32 = arith.constant 42 : i32
    %295 = arith.addi %0, %c42_i32 : i32
    %296 = arith.index_cast %295 : i32 to index
    %297 = memref.load %arg1[%296] : memref<128xi32, #tpu.memory_space<smem>>
    %298 = arith.index_cast %297 : i32 to index
    %c0_83 = arith.constant 0 : index
    %299 = vector.load %arg2[%298, %c0_83] : memref<512x2xf32, #tpu.memory_space<vmem>>, vector<1x2xf32>
    %300 = arith.index_cast %c42_i32 : i32 to index
    %c0_84 = arith.constant 0 : index
    %301 = vector.load %arg3[%300, %c0_84] : memref<64x2xf32, #tpu.memory_space<vmem>>, vector<1x2xf32>
    tpu.vector_store %arg3[%300, %c0_84], %299 {strides = array<i32>} : memref<64x2xf32, #tpu.memory_space<vmem>>, vector<1x2xf32>,
    %c43_i32 = arith.constant 43 : i32
    %302 = arith.addi %0, %c43_i32 : i32
    %303 = arith.index_cast %302 : i32 to index
    %304 = memref.load %arg1[%303] : memref<128xi32, #tpu.memory_space<smem>>
    %305 = arith.index_cast %304 : i32 to index
    %c0_85 = arith.constant 0 : index
    %306 = vector.load %arg2[%305, %c0_85] : memref<512x2xf32, #tpu.memory_space<vmem>>, vector<1x2xf32>
    %307 = arith.index_cast %c43_i32 : i32 to index
    %c0_86 = arith.constant 0 : index
    %308 = vector.load %arg3[%307, %c0_86] : memref<64x2xf32, #tpu.memory_space<vmem>>, vector<1x2xf32>
    tpu.vector_store %arg3[%307, %c0_86], %306 {strides = array<i32>} : memref<64x2xf32, #tpu.memory_space<vmem>>, vector<1x2xf32>,
    %c44_i32 = arith.constant 44 : i32
    %309 = arith.addi %0, %c44_i32 : i32
    %310 = arith.index_cast %309 : i32 to index
    %311 = memref.load %arg1[%310] : memref<128xi32, #tpu.memory_space<smem>>
    %312 = arith.index_cast %311 : i32 to index
    %c0_87 = arith.constant 0 : index
    %313 = vector.load %arg2[%312, %c0_87] : memref<512x2xf32, #tpu.memory_space<vmem>>, vector<1x2xf32>
    %314 = arith.index_cast %c44_i32 : i32 to index
    %c0_88 = arith.constant 0 : index
    %315 = vector.load %arg3[%314, %c0_88] : memref<64x2xf32, #tpu.memory_space<vmem>>, vector<1x2xf32>
    tpu.vector_store %arg3[%314, %c0_88], %313 {strides = array<i32>} : memref<64x2xf32, #tpu.memory_space<vmem>>, vector<1x2xf32>,
    %c45_i32 = arith.constant 45 : i32
    %316 = arith.addi %0, %c45_i32 : i32
    %317 = arith.index_cast %316 : i32 to index
    %318 = memref.load %arg1[%317] : memref<128xi32, #tpu.memory_space<smem>>
    %319 = arith.index_cast %318 : i32 to index
    %c0_89 = arith.constant 0 : index
    %320 = vector.load %arg2[%319, %c0_89] : memref<512x2xf32, #tpu.memory_space<vmem>>, vector<1x2xf32>
    %321 = arith.index_cast %c45_i32 : i32 to index
    %c0_90 = arith.constant 0 : index
    %322 = vector.load %arg3[%321, %c0_90] : memref<64x2xf32, #tpu.memory_space<vmem>>, vector<1x2xf32>
    tpu.vector_store %arg3[%321, %c0_90], %320 {strides = array<i32>} : memref<64x2xf32, #tpu.memory_space<vmem>>, vector<1x2xf32>,
    %c46_i32 = arith.constant 46 : i32
    %323 = arith.addi %0, %c46_i32 : i32
    %324 = arith.index_cast %323 : i32 to index
    %325 = memref.load %arg1[%324] : memref<128xi32, #tpu.memory_space<smem>>
    %326 = arith.index_cast %325 : i32 to index
    %c0_91 = arith.constant 0 : index
    %327 = vector.load %arg2[%326, %c0_91] : memref<512x2xf32, #tpu.memory_space<vmem>>, vector<1x2xf32>
    %328 = arith.index_cast %c46_i32 : i32 to index
    %c0_92 = arith.constant 0 : index
    %329 = vector.load %arg3[%328, %c0_92] : memref<64x2xf32, #tpu.memory_space<vmem>>, vector<1x2xf32>
    tpu.vector_store %arg3[%328, %c0_92], %327 {strides = array<i32>} : memref<64x2xf32, #tpu.memory_space<vmem>>, vector<1x2xf32>,
    %c47_i32 = arith.constant 47 : i32
    %330 = arith.addi %0, %c47_i32 : i32
    %331 = arith.index_cast %330 : i32 to index
    %332 = memref.load %arg1[%331] : memref<128xi32, #tpu.memory_space<smem>>
    %333 = arith.index_cast %332 : i32 to index
    %c0_93 = arith.constant 0 : index
    %334 = vector.load %arg2[%333, %c0_93] : memref<512x2xf32, #tpu.memory_space<vmem>>, vector<1x2xf32>
    %335 = arith.index_cast %c47_i32 : i32 to index
    %c0_94 = arith.constant 0 : index
    %336 = vector.load %arg3[%335, %c0_94] : memref<64x2xf32, #tpu.memory_space<vmem>>, vector<1x2xf32>
    tpu.vector_store %arg3[%335, %c0_94], %334 {strides = array<i32>} : memref<64x2xf32, #tpu.memory_space<vmem>>, vector<1x2xf32>,
    %c48_i32 = arith.constant 48 : i32
    %337 = arith.addi %0, %c48_i32 : i32
    %338 = arith.index_cast %337 : i32 to index
    %339 = memref.load %arg1[%338] : memref<128xi32, #tpu.memory_space<smem>>
    %340 = arith.index_cast %339 : i32 to index
    %c0_95 = arith.constant 0 : index
    %341 = vector.load %arg2[%340, %c0_95] : memref<512x2xf32, #tpu.memory_space<vmem>>, vector<1x2xf32>
    %342 = arith.index_cast %c48_i32 : i32 to index
    %c0_96 = arith.constant 0 : index
    %343 = vector.load %arg3[%342, %c0_96] : memref<64x2xf32, #tpu.memory_space<vmem>>, vector<1x2xf32>
    tpu.vector_store %arg3[%342, %c0_96], %341 {strides = array<i32>} : memref<64x2xf32, #tpu.memory_space<vmem>>, vector<1x2xf32>,
    %c49_i32 = arith.constant 49 : i32
    %344 = arith.addi %0, %c49_i32 : i32
    %345 = arith.index_cast %344 : i32 to index
    %346 = memref.load %arg1[%345] : memref<128xi32, #tpu.memory_space<smem>>
    %347 = arith.index_cast %346 : i32 to index
    %c0_97 = arith.constant 0 : index
    %348 = vector.load %arg2[%347, %c0_97] : memref<512x2xf32, #tpu.memory_space<vmem>>, vector<1x2xf32>
    %349 = arith.index_cast %c49_i32 : i32 to index
    %c0_98 = arith.constant 0 : index
    %350 = vector.load %arg3[%349, %c0_98] : memref<64x2xf32, #tpu.memory_space<vmem>>, vector<1x2xf32>
    tpu.vector_store %arg3[%349, %c0_98], %348 {strides = array<i32>} : memref<64x2xf32, #tpu.memory_space<vmem>>, vector<1x2xf32>,
    %c50_i32 = arith.constant 50 : i32
    %351 = arith.addi %0, %c50_i32 : i32
    %352 = arith.index_cast %351 : i32 to index
    %353 = memref.load %arg1[%352] : memref<128xi32, #tpu.memory_space<smem>>
    %354 = arith.index_cast %353 : i32 to index
    %c0_99 = arith.constant 0 : index
    %355 = vector.load %arg2[%354, %c0_99] : memref<512x2xf32, #tpu.memory_space<vmem>>, vector<1x2xf32>
    %356 = arith.index_cast %c50_i32 : i32 to index
    %c0_100 = arith.constant 0 : index
    %357 = vector.load %arg3[%356, %c0_100] : memref<64x2xf32, #tpu.memory_space<vmem>>, vector<1x2xf32>
    tpu.vector_store %arg3[%356, %c0_100], %355 {strides = array<i32>} : memref<64x2xf32, #tpu.memory_space<vmem>>, vector<1x2xf32>,
    %c51_i32 = arith.constant 51 : i32
    %358 = arith.addi %0, %c51_i32 : i32
    %359 = arith.index_cast %358 : i32 to index
    %360 = memref.load %arg1[%359] : memref<128xi32, #tpu.memory_space<smem>>
    %361 = arith.index_cast %360 : i32 to index
    %c0_101 = arith.constant 0 : index
    %362 = vector.load %arg2[%361, %c0_101] : memref<512x2xf32, #tpu.memory_space<vmem>>, vector<1x2xf32>
    %363 = arith.index_cast %c51_i32 : i32 to index
    %c0_102 = arith.constant 0 : index
    %364 = vector.load %arg3[%363, %c0_102] : memref<64x2xf32, #tpu.memory_space<vmem>>, vector<1x2xf32>
    tpu.vector_store %arg3[%363, %c0_102], %362 {strides = array<i32>} : memref<64x2xf32, #tpu.memory_space<vmem>>, vector<1x2xf32>,
    %c52_i32 = arith.constant 52 : i32
    %365 = arith.addi %0, %c52_i32 : i32
    %366 = arith.index_cast %365 : i32 to index
    %367 = memref.load %arg1[%366] : memref<128xi32, #tpu.memory_space<smem>>
    %368 = arith.index_cast %367 : i32 to index
    %c0_103 = arith.constant 0 : index
    %369 = vector.load %arg2[%368, %c0_103] : memref<512x2xf32, #tpu.memory_space<vmem>>, vector<1x2xf32>
    %370 = arith.index_cast %c52_i32 : i32 to index
    %c0_104 = arith.constant 0 : index
    %371 = vector.load %arg3[%370, %c0_104] : memref<64x2xf32, #tpu.memory_space<vmem>>, vector<1x2xf32>
    tpu.vector_store %arg3[%370, %c0_104], %369 {strides = array<i32>} : memref<64x2xf32, #tpu.memory_space<vmem>>, vector<1x2xf32>,
    %c53_i32 = arith.constant 53 : i32
    %372 = arith.addi %0, %c53_i32 : i32
    %373 = arith.index_cast %372 : i32 to index
    %374 = memref.load %arg1[%373] : memref<128xi32, #tpu.memory_space<smem>>
    %375 = arith.index_cast %374 : i32 to index
    %c0_105 = arith.constant 0 : index
    %376 = vector.load %arg2[%375, %c0_105] : memref<512x2xf32, #tpu.memory_space<vmem>>, vector<1x2xf32>
    %377 = arith.index_cast %c53_i32 : i32 to index
    %c0_106 = arith.constant 0 : index
    %378 = vector.load %arg3[%377, %c0_106] : memref<64x2xf32, #tpu.memory_space<vmem>>, vector<1x2xf32>
    tpu.vector_store %arg3[%377, %c0_106], %376 {strides = array<i32>} : memref<64x2xf32, #tpu.memory_space<vmem>>, vector<1x2xf32>,
    %c54_i32 = arith.constant 54 : i32
    %379 = arith.addi %0, %c54_i32 : i32
    %380 = arith.index_cast %379 : i32 to index
    %381 = memref.load %arg1[%380] : memref<128xi32, #tpu.memory_space<smem>>
    %382 = arith.index_cast %381 : i32 to index
    %c0_107 = arith.constant 0 : index
    %383 = vector.load %arg2[%382, %c0_107] : memref<512x2xf32, #tpu.memory_space<vmem>>, vector<1x2xf32>
    %384 = arith.index_cast %c54_i32 : i32 to index
    %c0_108 = arith.constant 0 : index
    %385 = vector.load %arg3[%384, %c0_108] : memref<64x2xf32, #tpu.memory_space<vmem>>, vector<1x2xf32>
    tpu.vector_store %arg3[%384, %c0_108], %383 {strides = array<i32>} : memref<64x2xf32, #tpu.memory_space<vmem>>, vector<1x2xf32>,
    %c55_i32 = arith.constant 55 : i32
    %386 = arith.addi %0, %c55_i32 : i32
    %387 = arith.index_cast %386 : i32 to index
    %388 = memref.load %arg1[%387] : memref<128xi32, #tpu.memory_space<smem>>
    %389 = arith.index_cast %388 : i32 to index
    %c0_109 = arith.constant 0 : index
    %390 = vector.load %arg2[%389, %c0_109] : memref<512x2xf32, #tpu.memory_space<vmem>>, vector<1x2xf32>
    %391 = arith.index_cast %c55_i32 : i32 to index
    %c0_110 = arith.constant 0 : index
    %392 = vector.load %arg3[%391, %c0_110] : memref<64x2xf32, #tpu.memory_space<vmem>>, vector<1x2xf32>
    tpu.vector_store %arg3[%391, %c0_110], %390 {strides = array<i32>} : memref<64x2xf32, #tpu.memory_space<vmem>>, vector<1x2xf32>,
    %c56_i32 = arith.constant 56 : i32
    %393 = arith.addi %0, %c56_i32 : i32
    %394 = arith.index_cast %393 : i32 to index
    %395 = memref.load %arg1[%394] : memref<128xi32, #tpu.memory_space<smem>>
    %396 = arith.index_cast %395 : i32 to index
    %c0_111 = arith.constant 0 : index
    %397 = vector.load %arg2[%396, %c0_111] : memref<512x2xf32, #tpu.memory_space<vmem>>, vector<1x2xf32>
    %398 = arith.index_cast %c56_i32 : i32 to index
    %c0_112 = arith.constant 0 : index
    %399 = vector.load %arg3[%398, %c0_112] : memref<64x2xf32, #tpu.memory_space<vmem>>, vector<1x2xf32>
    tpu.vector_store %arg3[%398, %c0_112], %397 {strides = array<i32>} : memref<64x2xf32, #tpu.memory_space<vmem>>, vector<1x2xf32>,
    %c57_i32 = arith.constant 57 : i32
    %400 = arith.addi %0, %c57_i32 : i32
    %401 = arith.index_cast %400 : i32 to index
    %402 = memref.load %arg1[%401] : memref<128xi32, #tpu.memory_space<smem>>
    %403 = arith.index_cast %402 : i32 to index
    %c0_113 = arith.constant 0 : index
    %404 = vector.load %arg2[%403, %c0_113] : memref<512x2xf32, #tpu.memory_space<vmem>>, vector<1x2xf32>
    %405 = arith.index_cast %c57_i32 : i32 to index
    %c0_114 = arith.constant 0 : index
    %406 = vector.load %arg3[%405, %c0_114] : memref<64x2xf32, #tpu.memory_space<vmem>>, vector<1x2xf32>
    tpu.vector_store %arg3[%405, %c0_114], %404 {strides = array<i32>} : memref<64x2xf32, #tpu.memory_space<vmem>>, vector<1x2xf32>,
    %c58_i32 = arith.constant 58 : i32
    %407 = arith.addi %0, %c58_i32 : i32
    %408 = arith.index_cast %407 : i32 to index
    %409 = memref.load %arg1[%408] : memref<128xi32, #tpu.memory_space<smem>>
    %410 = arith.index_cast %409 : i32 to index
    %c0_115 = arith.constant 0 : index
    %411 = vector.load %arg2[%410, %c0_115] : memref<512x2xf32, #tpu.memory_space<vmem>>, vector<1x2xf32>
    %412 = arith.index_cast %c58_i32 : i32 to index
    %c0_116 = arith.constant 0 : index
    %413 = vector.load %arg3[%412, %c0_116] : memref<64x2xf32, #tpu.memory_space<vmem>>, vector<1x2xf32>
    tpu.vector_store %arg3[%412, %c0_116], %411 {strides = array<i32>} : memref<64x2xf32, #tpu.memory_space<vmem>>, vector<1x2xf32>,
    %c59_i32 = arith.constant 59 : i32
    %414 = arith.addi %0, %c59_i32 : i32
    %415 = arith.index_cast %414 : i32 to index
    %416 = memref.load %arg1[%415] : memref<128xi32, #tpu.memory_space<smem>>
    %417 = arith.index_cast %416 : i32 to index
    %c0_117 = arith.constant 0 : index
    %418 = vector.load %arg2[%417, %c0_117] : memref<512x2xf32, #tpu.memory_space<vmem>>, vector<1x2xf32>
    %419 = arith.index_cast %c59_i32 : i32 to index
    %c0_118 = arith.constant 0 : index
    %420 = vector.load %arg3[%419, %c0_118] : memref<64x2xf32, #tpu.memory_space<vmem>>, vector<1x2xf32>
    tpu.vector_store %arg3[%419, %c0_118], %418 {strides = array<i32>} : memref<64x2xf32, #tpu.memory_space<vmem>>, vector<1x2xf32>,
    %c60_i32 = arith.constant 60 : i32
    %421 = arith.addi %0, %c60_i32 : i32
    %422 = arith.index_cast %421 : i32 to index
    %423 = memref.load %arg1[%422] : memref<128xi32, #tpu.memory_space<smem>>
    %424 = arith.index_cast %423 : i32 to index
    %c0_119 = arith.constant 0 : index
    %425 = vector.load %arg2[%424, %c0_119] : memref<512x2xf32, #tpu.memory_space<vmem>>, vector<1x2xf32>
    %426 = arith.index_cast %c60_i32 : i32 to index
    %c0_120 = arith.constant 0 : index
    %427 = vector.load %arg3[%426, %c0_120] : memref<64x2xf32, #tpu.memory_space<vmem>>, vector<1x2xf32>
    tpu.vector_store %arg3[%426, %c0_120], %425 {strides = array<i32>} : memref<64x2xf32, #tpu.memory_space<vmem>>, vector<1x2xf32>,
    %c61_i32 = arith.constant 61 : i32
    %428 = arith.addi %0, %c61_i32 : i32
    %429 = arith.index_cast %428 : i32 to index
    %430 = memref.load %arg1[%429] : memref<128xi32, #tpu.memory_space<smem>>
    %431 = arith.index_cast %430 : i32 to index
    %c0_121 = arith.constant 0 : index
    %432 = vector.load %arg2[%431, %c0_121] : memref<512x2xf32, #tpu.memory_space<vmem>>, vector<1x2xf32>
    %433 = arith.index_cast %c61_i32 : i32 to index
    %c0_122 = arith.constant 0 : index
    %434 = vector.load %arg3[%433, %c0_122] : memref<64x2xf32, #tpu.memory_space<vmem>>, vector<1x2xf32>
    tpu.vector_store %arg3[%433, %c0_122], %432 {strides = array<i32>} : memref<64x2xf32, #tpu.memory_space<vmem>>, vector<1x2xf32>,
    %c62_i32 = arith.constant 62 : i32
    %435 = arith.addi %0, %c62_i32 : i32
    %436 = arith.index_cast %435 : i32 to index
    %437 = memref.load %arg1[%436] : memref<128xi32, #tpu.memory_space<smem>>
    %438 = arith.index_cast %437 : i32 to index
    %c0_123 = arith.constant 0 : index
    %439 = vector.load %arg2[%438, %c0_123] : memref<512x2xf32, #tpu.memory_space<vmem>>, vector<1x2xf32>
    %440 = arith.index_cast %c62_i32 : i32 to index
    %c0_124 = arith.constant 0 : index
    %441 = vector.load %arg3[%440, %c0_124] : memref<64x2xf32, #tpu.memory_space<vmem>>, vector<1x2xf32>
    tpu.vector_store %arg3[%440, %c0_124], %439 {strides = array<i32>} : memref<64x2xf32, #tpu.memory_space<vmem>>, vector<1x2xf32>,
    %c63_i32 = arith.constant 63 : i32
    %442 = arith.addi %0, %c63_i32 : i32
    %443 = arith.index_cast %442 : i32 to index
    %444 = memref.load %arg1[%443] : memref<128xi32, #tpu.memory_space<smem>>
    %445 = arith.index_cast %444 : i32 to index
    %c0_125 = arith.constant 0 : index
    %446 = vector.load %arg2[%445, %c0_125] : memref<512x2xf32, #tpu.memory_space<vmem>>, vector<1x2xf32>
    %447 = arith.index_cast %c63_i32 : i32 to index
    %c0_126 = arith.constant 0 : index
    %448 = vector.load %arg3[%447, %c0_126] : memref<64x2xf32, #tpu.memory_space<vmem>>, vector<1x2xf32>
    tpu.vector_store %arg3[%447, %c0_126], %446 {strides = array<i32>} : memref<64x2xf32, #tpu.memory_space<vmem>>, vector<1x2xf32>,
    %c64_i32_127 = arith.constant 64 : i32
    return
  }
  func.func @transform_0(%arg0: i32, %arg1: memref<128xi32, #tpu.memory_space<smem>>) -> (i32, i32) {
    %c0_i32 = arith.constant 0 : i32
    %c0_i32_0 = arith.constant 0 : i32
    %c0_i32_1 = arith.constant 0 : i32
    return %c0_i32, %c0_i32_0 : i32, i32
  }
  func.func @transform_1(%arg0: i32, %arg1: memref<128xi32, #tpu.memory_space<smem>>) -> (i32, i32) {
    %c0_i32 = arith.constant 0 : i32
    %c0_i32_0 = arith.constant 0 : i32
    return %arg0, %c0_i32 : i32, i32
  }
}

</mosaic_0001>

<llo_original>
// kernel: tpu_custom_call.1
$region0: #{tpu_custom_call.1}
  #allocation0 [shape = 'u32[]', space=smem, size = 0x4, offset = 0x4, fixed_abs, tag = 'smem constant byte address 0x4 - core index']
  #allocation1 [shape = 'u32[144,128]{1,0:T(1,128)}', space=vmem, size = 0x12000, scoped, tag = 'internal scratch']
  #allocation2 [shape = 's32[1]{0}', space=sflag, size = 0x4, scoped, tag = 'scoped memory for tpu_custom_call.1']
  #allocation3 [shape = 'u8[512]{0}', space=smem, size = 0x200, scoped, tag = 'prefetched SMEM operand 0']
  %s0 = inlined_call_operand.vmem [shape: s32[128], index: 0, kind: input, shape index: {}]
  %s1 = inlined_call_operand.vmem [shape: f32[512,2], index: 1, kind: input, shape index: {}]
  %s2 = inlined_call_operand.vmem [shape: f32[128,2], index: 2, kind: output, shape index: {}]
  %s3 = sld [smem:[#allocation0]]
  $region37: #{tpu_custom_call.1} parent=0
    _
  %s5 = ssub.s32 1, %s3
  %s6 = scalar_select 0, %s5, %s3
  %s7 = sshll.u32 %s0, 4
  %s8 = int_to_ptr.vmem [resolvable:$true] %s7
  %10 = dma.vmem_to_smem %s8, 16, [#allocation3], [#allocation2]
  %11 = dma.done [#allocation2], 16
  %12 = sfence
  loop: start=0, step=1, limit=4
  $region2: #{tpu_custom_call.1} parent=0 // loop_pre_header
    _
  $region3: #{tpu_custom_call.1} parent=0 // loop_header
    %s14 = sphi 0, %s18
    %p15 = scmp.ge.s32.totalorder %s14, 4
    %s22 = sphi 0, %s22
    %s24 = sphi 0, %s22
    %s25 = sphi 0, %s24
    %s39 = sphi 0, %s25
    %s45 = sphi 0, %s47
    %s48 = sphi 0, %s45
    %s49 = sphi 0, %s48
    %s65 = sphi 0, %s49
  $region4: #{tpu_custom_call.1} parent=0 // loop_header_branch
    %17 = sbr.rel (%p15) target = $region8
  $region5: #{tpu_custom_call.1} parent=0 // loop_body
    %s19 = ssub.s32 %s14, 1
    %s20 = ssub.s32 %s14, 2
    %s21 = sadd.s32 %s14, 1
    %s23 = sadd.s32 %s22, 1
    %p26 = scmp.eq.s32.totalorder %s14, 1
    %p27 = scmp.ne.s32.totalorder %s22, %s24
    %p28 = scmp.eq.s32.totalorder %s14, 0
    %p29 = por %p27, %p28
    %p30 = scmp.ne.s32.totalorder %s22, %s24
    %p31 = scmp.eq.s32.totalorder %s19, 1
    %p32 = por %p30, %p31
    %p33 = scmp.ne.s32.totalorder %s24, %s25
    %p34 = scmp.eq.s32.totalorder %s19, 0
    %p35 = por %p33, %p34
    %p36 = scmp.ne.s32.totalorder %s24, %s25
    %p37 = scmp.eq.s32.totalorder %s20, 1
    %p38 = por %p36, %p37
    %p40 = scmp.ne.s32.totalorder %s25, %s39
    %p41 = scmp.eq.s32.totalorder %s20, 0
    %p42 = por %p40, %p41
    %s43 = ssub.s32 %s14, %s21
    %p44 = scmp.eq.s32.totalorder %s43, 0
    %s46 = sadd.s32 %s45, 1
    %s47 = scalar_select %p44, %s45, %s46
    %p50 = pneg %p44
    %p51 = scmp.eq.s32.totalorder %s14, 1
    %p52 = por %p50, %p51
    %p53 = scmp.ne.s32.totalorder %s45, %s48
    %p54 = scmp.eq.s32.totalorder %s14, 0
    %p55 = por %p53, %p54
    %p56 = scmp.ne.s32.totalorder %s45, %s48
    %p57 = scmp.eq.s32.totalorder %s19, 1
    %p58 = por %p56, %p57
    %p59 = scmp.ne.s32.totalorder %s48, %s49
    %p60 = scmp.eq.s32.totalorder %s19, 0
    %p61 = por %p59, %p60
    %p62 = scmp.ne.s32.totalorder %s48, %s49
    %p63 = scmp.eq.s32.totalorder %s20, 1
    %p64 = por %p62, %p63
    %p66 = scmp.ne.s32.totalorder %s49, %s65
    %p67 = scmp.eq.s32.totalorder %s20, 0
    %p68 = por %p66, %p67
    %p69 = scmp.le.s32.totalorder 1, %s14
    %p70 = scmp.lt.s32.totalorder %s14, 3
    %p71 = pnand %p69, %p70
    %p72 = pneg %p71
    // Predicated region
    $region9: #{tpu_custom_call.1} parent=5 // pred_check
      _
    $region10: #{tpu_custom_call.1} parent=5 // pred_check_branch
      %74 = sbr.rel (%p71) target = $region12
    $region11: #{tpu_custom_call.1} parent=5 // pred_region
      %s75 = ssub.s32 %s14, 1
      // Predicated region
      $region13: #{tpu_custom_call.1} parent=11 // pred_check
        %p76 = pneg %p35
      $region14: #{tpu_custom_call.1} parent=11 // pred_check_branch
        %78 = sbr.rel (%p76) target = $region16
      $region15: #{tpu_custom_call.1} parent=11 // pred_region
        _
      $region16: #{tpu_custom_call.1} parent=11 // pred_fallthru
        _
    $region12: #{tpu_custom_call.1} parent=5 // pred_fallthru
      _
    %p79 = scmp.lt.s32.totalorder %s14, 2
    // Predicated region
    $region17: #{tpu_custom_call.1} parent=5 // pred_check
      %p80 = pneg %p79
    $region18: #{tpu_custom_call.1} parent=5 // pred_check_branch
      %82 = sbr.rel (%p80) target = $region20
    $region19: #{tpu_custom_call.1} parent=5 // pred_region
      _
    $region20: #{tpu_custom_call.1} parent=5 // pred_fallthru
      _
    %p83 = scmp.le.s32.totalorder 1, %s14
    %p84 = scmp.lt.s32.totalorder %s14, 3
    %p85 = pnand %p83, %p84
    %p86 = pneg %p85
    // Predicated region
    $region21: #{tpu_custom_call.1} parent=5 // pred_check
      _
    $region22: #{tpu_custom_call.1} parent=5 // pred_check_branch
      %88 = sbr.rel (%p85) target = $region24
    $region23: #{tpu_custom_call.1} parent=5 // pred_region
      %s89 = ssub.s32 %s14, 1
      %p90 = pneg %p35
      %p91 = pneg %p32
      %p92 = pneg %p61
      %p93 = pneg %p58
      %s94 = smul.u32 8, %s19
      %p95 = scmp.lt.s32.totalorder %s94, 15
      %s96 = scalar_select %p95, %s94, 15
      %s97 = smul.addr %s96, 8
      %s98 = scalar_lea.vmem %s2, %s97
      %s99 = smul.u32 8, %s19
      %p100 = scmp.lt.s32.totalorder %s99, 15
      %s101 = scalar_select %p100, %s99, 15
      %s102 = smul.addr %s101, 8
      %s103 = scalar_lea.vmem %s2, %s102
      %s104 = smul.u32 8, %s19
      %s105 = smul.u32 %s19, 64
      %s106 = sld [smem:[#allocation3 + %s105]]
      %s107 = scalar_lea.vmem %s1, %s106
      %v108 = vld [vmem:[%s107] sm:$0x1]
      %vm109 = vcmask 8192
      %110 = vst.msk [vmem:[%s103] sm:$0x1] %vm109, %v108
      %s111 = sadd.s32 %s105, 1
      %s112 = sld [smem:[#allocation3 + %s111]]
      %s113 = scalar_lea.vmem %s1, %s112
      %v114 = vld [vmem:[%s113] sm:$0x1]
      %115 = vst.msk [vmem:[%s103 + $0x1] sm:$0x1] %vm109, %v114
      %s116 = sadd.s32 %s105, 2
      %s117 = sld [smem:[#allocation3 + %s116]]
      %s118 = scalar_lea.vmem %s1, %s117
      %v119 = vld [vmem:[%s118] sm:$0x1]
      %120 = vst.msk [vmem:[%s103 + $0x2] sm:$0x1] %vm109, %v119
      %s121 = sadd.s32 %s105, 3
      %s122 = sld [smem:[#allocation3 + %s121]]
      %s123 = scalar_lea.vmem %s1, %s122
      %v124 = vld [vmem:[%s123] sm:$0x1]
      %125 = vst.msk [vmem:[%s103 + $0x3] sm:$0x1] %vm109, %v124
      %s126 = sadd.s32 %s105, 4
      %s127 = sld [smem:[#allocation3 + %s126]]
      %s128 = scalar_lea.vmem %s1, %s127
      %v129 = vld [vmem:[%s128] sm:$0x1]
      %130 = vst.msk [vmem:[%s103 + $0x4] sm:$0x1] %vm109, %v129
      %s131 = sadd.s32 %s105, 5
      %s132 = sld [smem:[#allocation3 + %s131]]
      %s133 = scalar_lea.vmem %s1, %s132
      %v134 = vld [vmem:[%s133] sm:$0x1]
      %135 = vst.msk [vmem:[%s103 + $0x5] sm:$0x1] %vm109, %v134
      %s136 = sadd.s32 %s105, 6
      %s137 = sld [smem:[#allocation3 + %s136]]
      %s138 = scalar_lea.vmem %s1, %s137
      %v139 = vld [vmem:[%s138] sm:$0x1]
      %140 = vst.msk [vmem:[%s103 + $0x6] sm:$0x1] %vm109, %v139
      %s141 = sadd.s32 %s105, 7
      %s142 = sld [smem:[#allocation3 + %s141]]
      %s143 = scalar_lea.vmem %s1, %s142
      %v144 = vld [vmem:[%s143] sm:$0x1]
      %145 = vst.msk [vmem:[%s103 + $0x7] sm:$0x1] %vm109, %v144
      %s146 = sadd.s32 %s105, 8
      %s147 = sld [smem:[#allocation3 + %s146]]
      %s148 = scalar_lea.vmem %s1, %s147
      %v149 = vld [vmem:[%s148] sm:$0x1]
      %150 = vst.msk [vmem:[%s103 + $0x8] sm:$0x1] %vm109, %v149
      %s151 = sadd.s32 %s105, 9
      %s152 = sld [smem:[#allocation3 + %s151]]
      %s153 = scalar_lea.vmem %s1, %s152
      %v154 = vld [vmem:[%s153] sm:$0x1]
      %155 = vst.msk [vmem:[%s103 + $0x9] sm:$0x1] %vm109, %v154
      %s156 = sadd.s32 %s105, 10
      %s157 = sld [smem:[#allocation3 + %s156]]
      %s158 = scalar_lea.vmem %s1, %s157
      %v159 = vld [vmem:[%s158] sm:$0x1]
      %160 = vst.msk [vmem:[%s103 + $0xa] sm:$0x1] %vm109, %v159
      %s161 = sadd.s32 %s105, 11
      %s162 = sld [smem:[#allocation3 + %s161]]
      %s163 = scalar_lea.vmem %s1, %s162
      %v164 = vld [vmem:[%s163] sm:$0x1]
      %165 = vst.msk [vmem:[%s103 + $0xb] sm:$0x1] %vm109, %v164
      %s166 = sadd.s32 %s105, 12
      %s167 = sld [smem:[#allocation3 + %s166]]
      %s168 = scalar_lea.vmem %s1, %s167
      %v169 = vld [vmem:[%s168] sm:$0x1]
      %170 = vst.msk [vmem:[%s103 + $0xc] sm:$0x1] %vm109, %v169
      %s171 = sadd.s32 %s105, 13
      %s172 = sld [smem:[#allocation3 + %s171]]
      %s173 = scalar_lea.vmem %s1, %s172
      %v174 = vld [vmem:[%s173] sm:$0x1]
      %175 = vst.msk [vmem:[%s103 + $0xd] sm:$0x1] %vm109, %v174
      %s176 = sadd.s32 %s105, 14
      %s177 = sld [smem:[#allocation3 + %s176]]
      %s178 = scalar_lea.vmem %s1, %s177
      %v179 = vld [vmem:[%s178] sm:$0x1]
      %180 = vst.msk [vmem:[%s103 + $0xe] sm:$0x1] %vm109, %v179
      %s181 = sadd.s32 %s105, 15
      %s182 = sld [smem:[#allocation3 + %s181]]
      %s183 = scalar_lea.vmem %s1, %s182
      %v184 = vld [vmem:[%s183] sm:$0x1]
      %185 = vst.msk [vmem:[%s103 + $0xf] sm:$0x1] %vm109, %v184
      %s186 = sadd.s32 %s105, 16
      %s187 = sld [smem:[#allocation3 + %s186]]
      %s188 = scalar_lea.vmem %s1, %s187
      %v189 = vld [vmem:[%s188] sm:$0x1]
      %190 = vst.msk [vmem:[%s103 + $0x10] sm:$0x1] %vm109, %v189
      %s191 = sadd.s32 %s105, 17
      %s192 = sld [smem:[#allocation3 + %s191]]
      %s193 = scalar_lea.vmem %s1, %s192
      %v194 = vld [vmem:[%s193] sm:$0x1]
      %195 = vst.msk [vmem:[%s103 + $0x11] sm:$0x1] %vm109, %v194
      %s196 = sadd.s32 %s105, 18
      %s197 = sld [smem:[#allocation3 + %s196]]
      %s198 = scalar_lea.vmem %s1, %s197
      %v199 = vld [vmem:[%s198] sm:$0x1]
      %200 = vst.msk [vmem:[%s103 + $0x12] sm:$0x1] %vm109, %v199
      %s201 = sadd.s32 %s105, 19
      %s202 = sld [smem:[#allocation3 + %s201]]
      %s203 = scalar_lea.vmem %s1, %s202
      %v204 = vld [vmem:[%s203] sm:$0x1]
      %205 = vst.msk [vmem:[%s103 + $0x13] sm:$0x1] %vm109, %v204
      %s206 = sadd.s32 %s105, 20
      %s207 = sld [smem:[#allocation3 + %s206]]
      %s208 = scalar_lea.vmem %s1, %s207
      %v209 = vld [vmem:[%s208] sm:$0x1]
      %210 = vst.msk [vmem:[%s103 + $0x14] sm:$0x1] %vm109, %v209
      %s211 = sadd.s32 %s105, 21
      %s212 = sld [smem:[#allocation3 + %s211]]
      %s213 = scalar_lea.vmem %s1, %s212
      %v214 = vld [vmem:[%s213] sm:$0x1]
      %215 = vst.msk [vmem:[%s103 + $0x15] sm:$0x1] %vm109, %v214
      %s216 = sadd.s32 %s105, 22
      %s217 = sld [smem:[#allocation3 + %s216]]
      %s218 = scalar_lea.vmem %s1, %s217
      %v219 = vld [vmem:[%s218] sm:$0x1]
      %220 = vst.msk [vmem:[%s103 + $0x16] sm:$0x1] %vm109, %v219
      %s221 = sadd.s32 %s105, 23
      %s222 = sld [smem:[#allocation3 + %s221]]
      %s223 = scalar_lea.vmem %s1, %s222
      %v224 = vld [vmem:[%s223] sm:$0x1]
      %225 = vst.msk [vmem:[%s103 + $0x17] sm:$0x1] %vm109, %v224
      %s226 = sadd.s32 %s105, 24
      %s227 = sld [smem:[#allocation3 + %s226]]
      %s228 = scalar_lea.vmem %s1, %s227
      %v229 = vld [vmem:[%s228] sm:$0x1]
      %230 = vst.msk [vmem:[%s103 + $0x18] sm:$0x1] %vm109, %v229
      %s231 = sadd.s32 %s105, 25
      %s232 = sld [smem:[#allocation3 + %s231]]
      %s233 = scalar_lea.vmem %s1, %s232
      %v234 = vld [vmem:[%s233] sm:$0x1]
      %235 = vst.msk [vmem:[%s103 + $0x19] sm:$0x1] %vm109, %v234
      %s236 = sadd.s32 %s105, 26
      %s237 = sld [smem:[#allocation3 + %s236]]
      %s238 = scalar_lea.vmem %s1, %s237
      %v239 = vld [vmem:[%s238] sm:$0x1]
      %240 = vst.msk [vmem:[%s103 + $0x1a] sm:$0x1] %vm109, %v239
      %s241 = sadd.s32 %s105, 27
      %s242 = sld [smem:[#allocation3 + %s241]]
      %s243 = scalar_lea.vmem %s1, %s242
      %v244 = vld [vmem:[%s243] sm:$0x1]
      %245 = vst.msk [vmem:[%s103 + $0x1b] sm:$0x1] %vm109, %v244
      %s246 = sadd.s32 %s105, 28
      %s247 = sld [smem:[#allocation3 + %s246]]
      %s248 = scalar_lea.vmem %s1, %s247
      %v249 = vld [vmem:[%s248] sm:$0x1]
      %250 = vst.msk [vmem:[%s103 + $0x1c] sm:$0x1] %vm109, %v249
      %s251 = sadd.s32 %s105, 29
      %s252 = sld [smem:[#allocation3 + %s251]]
      %s253 = scalar_lea.vmem %s1, %s252
      %v254 = vld [vmem:[%s253] sm:$0x1]
      %255 = vst.msk [vmem:[%s103 + $0x1d] sm:$0x1] %vm109, %v254
      %s256 = sadd.s32 %s105, 30
      %s257 = sld [smem:[#allocation3 + %s256]]
      %s258 = scalar_lea.vmem %s1, %s257
      %v259 = vld [vmem:[%s258] sm:$0x1]
      %260 = vst.msk [vmem:[%s103 + $0x1e] sm:$0x1] %vm109, %v259
      %s261 = sadd.s32 %s105, 31
      %s262 = sld [smem:[#allocation3 + %s261]]
      %s263 = scalar_lea.vmem %s1, %s262
      %v264 = vld [vmem:[%s263] sm:$0x1]
      %265 = vst.msk [vmem:[%s103 + $0x1f] sm:$0x1] %vm109, %v264
      %s266 = sadd.s32 %s105, 32
      %s267 = sld [smem:[#allocation3 + %s266]]
      %s268 = scalar_lea.vmem %s1, %s267
      %v269 = vld [vmem:[%s268] sm:$0x1]
      %270 = vst.msk [vmem:[%s103 + $0x20] sm:$0x1] %vm109, %v269
      %s271 = sadd.s32 %s105, 33
      %s272 = sld [smem:[#allocation3 + %s271]]
      %s273 = scalar_lea.vmem %s1, %s272
      %v274 = vld [vmem:[%s273] sm:$0x1]
      %275 = vst.msk [vmem:[%s103 + $0x21] sm:$0x1] %vm109, %v274
      %s276 = sadd.s32 %s105, 34
      %s277 = sld [smem:[#allocation3 + %s276]]
      %s278 = scalar_lea.vmem %s1, %s277
      %v279 = vld [vmem:[%s278] sm:$0x1]
      %280 = vst.msk [vmem:[%s103 + $0x22] sm:$0x1] %vm109, %v279
      %s281 = sadd.s32 %s105, 35
      %s282 = sld [smem:[#allocation3 + %s281]]
      %s283 = scalar_lea.vmem %s1, %s282
      %v284 = vld [vmem:[%s283] sm:$0x1]
      %285 = vst.msk [vmem:[%s103 + $0x23] sm:$0x1] %vm109, %v284
      %s286 = sadd.s32 %s105, 36
      %s287 = sld [smem:[#allocation3 + %s286]]
      %s288 = scalar_lea.vmem %s1, %s287
      %v289 = vld [vmem:[%s288] sm:$0x1]
      %290 = vst.msk [vmem:[%s103 + $0x24] sm:$0x1] %vm109, %v289
      %s291 = sadd.s32 %s105, 37
      %s292 = sld [smem:[#allocation3 + %s291]]
      %s293 = scalar_lea.vmem %s1, %s292
      %v294 = vld [vmem:[%s293] sm:$0x1]
      %295 = vst.msk [vmem:[%s103 + $0x25] sm:$0x1] %vm109, %v294
      %s296 = sadd.s32 %s105, 38
      %s297 = sld [smem:[#allocation3 + %s296]]
      %s298 = scalar_lea.vmem %s1, %s297
      %v299 = vld [vmem:[%s298] sm:$0x1]
      %300 = vst.msk [vmem:[%s103 + $0x26] sm:$0x1] %vm109, %v299
      %s301 = sadd.s32 %s105, 39
      %s302 = sld [smem:[#allocation3 + %s301]]
      %s303 = scalar_lea.vmem %s1, %s302
      %v304 = vld [vmem:[%s303] sm:$0x1]
      %305 = vst.msk [vmem:[%s103 + $0x27] sm:$0x1] %vm109, %v304
      %s306 = sadd.s32 %s105, 40
      %s307 = sld [smem:[#allocation3 + %s306]]
      %s308 = scalar_lea.vmem %s1, %s307
      %v309 = vld [vmem:[%s308] sm:$0x1]
      %310 = vst.msk [vmem:[%s103 + $0x28] sm:$0x1] %vm109, %v309
      %s311 = sadd.s32 %s105, 41
      %s312 = sld [smem:[#allocation3 + %s311]]
      %s313 = scalar_lea.vmem %s1, %s312
      %v314 = vld [vmem:[%s313] sm:$0x1]
      %315 = vst.msk [vmem:[%s103 + $0x29] sm:$0x1] %vm109, %v314
      %s316 = sadd.s32 %s105, 42
      %s317 = sld [smem:[#allocation3 + %s316]]
      %s318 = scalar_lea.vmem %s1, %s317
      %v319 = vld [vmem:[%s318] sm:$0x1]
      %320 = vst.msk [vmem:[%s103 + $0x2a] sm:$0x1] %vm109, %v319
      %s321 = sadd.s32 %s105, 43
      %s322 = sld [smem:[#allocation3 + %s321]]
      %s323 = scalar_lea.vmem %s1, %s322
      %v324 = vld [vmem:[%s323] sm:$0x1]
      %325 = vst.msk [vmem:[%s103 + $0x2b] sm:$0x1] %vm109, %v324
      %s326 = sadd.s32 %s105, 44
      %s327 = sld [smem:[#allocation3 + %s326]]
      %s328 = scalar_lea.vmem %s1, %s327
      %v329 = vld [vmem:[%s328] sm:$0x1]
      %330 = vst.msk [vmem:[%s103 + $0x2c] sm:$0x1] %vm109, %v329
      %s331 = sadd.s32 %s105, 45
      %s332 = sld [smem:[#allocation3 + %s331]]
      %s333 = scalar_lea.vmem %s1, %s332
      %v334 = vld [vmem:[%s333] sm:$0x1]
      %335 = vst.msk [vmem:[%s103 + $0x2d] sm:$0x1] %vm109, %v334
      %s336 = sadd.s32 %s105, 46
      %s337 = sld [smem:[#allocation3 + %s336]]
      %s338 = scalar_lea.vmem %s1, %s337
      %v339 = vld [vmem:[%s338] sm:$0x1]
      %340 = vst.msk [vmem:[%s103 + $0x2e] sm:$0x1] %vm109, %v339
      %s341 = sadd.s32 %s105, 47
      %s342 = sld [smem:[#allocation3 + %s341]]
      %s343 = scalar_lea.vmem %s1, %s342
      %v344 = vld [vmem:[%s343] sm:$0x1]
      %345 = vst.msk [vmem:[%s103 + $0x2f] sm:$0x1] %vm109, %v344
      %s346 = sadd.s32 %s105, 48
      %s347 = sld [smem:[#allocation3 + %s346]]
      %s348 = scalar_lea.vmem %s1, %s347
      %v349 = vld [vmem:[%s348] sm:$0x1]
      %350 = vst.msk [vmem:[%s103 + $0x30] sm:$0x1] %vm109, %v349
      %s351 = sadd.s32 %s105, 49
      %s352 = sld [smem:[#allocation3 + %s351]]
      %s353 = scalar_lea.vmem %s1, %s352
      %v354 = vld [vmem:[%s353] sm:$0x1]
      %355 = vst.msk [vmem:[%s103 + $0x31] sm:$0x1] %vm109, %v354
      %s356 = sadd.s32 %s105, 50
      %s357 = sld [smem:[#allocation3 + %s356]]
      %s358 = scalar_lea.vmem %s1, %s357
      %v359 = vld [vmem:[%s358] sm:$0x1]
      %360 = vst.msk [vmem:[%s103 + $0x32] sm:$0x1] %vm109, %v359
      %s361 = sadd.s32 %s105, 51
      %s362 = sld [smem:[#allocation3 + %s361]]
      %s363 = scalar_lea.vmem %s1, %s362
      %v364 = vld [vmem:[%s363] sm:$0x1]
      %365 = vst.msk [vmem:[%s103 + $0x33] sm:$0x1] %vm109, %v364
      %s366 = sadd.s32 %s105, 52
      %s367 = sld [smem:[#allocation3 + %s366]]
      %s368 = scalar_lea.vmem %s1, %s367
      %v369 = vld [vmem:[%s368] sm:$0x1]
      %370 = vst.msk [vmem:[%s103 + $0x34] sm:$0x1] %vm109, %v369
      %s371 = sadd.s32 %s105, 53
      %s372 = sld [smem:[#allocation3 + %s371]]
      %s373 = scalar_lea.vmem %s1, %s372
      %v374 = vld [vmem:[%s373] sm:$0x1]
      %375 = vst.msk [vmem:[%s103 + $0x35] sm:$0x1] %vm109, %v374
      %s376 = sadd.s32 %s105, 54
      %s377 = sld [smem:[#allocation3 + %s376]]
      %s378 = scalar_lea.vmem %s1, %s377
      %v379 = vld [vmem:[%s378] sm:$0x1]
      %380 = vst.msk [vmem:[%s103 + $0x36] sm:$0x1] %vm109, %v379
      %s381 = sadd.s32 %s105, 55
      %s382 = sld [smem:[#allocation3 + %s381]]
      %s383 = scalar_lea.vmem %s1, %s382
      %v384 = vld [vmem:[%s383] sm:$0x1]
      %385 = vst.msk [vmem:[%s103 + $0x37] sm:$0x1] %vm109, %v384
      %s386 = sadd.s32 %s105, 56
      %s387 = sld [smem:[#allocation3 + %s386]]
      %s388 = scalar_lea.vmem %s1, %s387
      %v389 = vld [vmem:[%s388] sm:$0x1]
      %390 = vst.msk [vmem:[%s103 + $0x38] sm:$0x1] %vm109, %v389
      %s391 = sadd.s32 %s105, 57
      %s392 = sld [smem:[#allocation3 + %s391]]
      %s393 = scalar_lea.vmem %s1, %s392
      %v394 = vld [vmem:[%s393] sm:$0x1]
      %395 = vst.msk [vmem:[%s103 + $0x39] sm:$0x1] %vm109, %v394
      %s396 = sadd.s32 %s105, 58
      %s397 = sld [smem:[#allocation3 + %s396]]
      %s398 = scalar_lea.vmem %s1, %s397
      %v399 = vld [vmem:[%s398] sm:$0x1]
      %400 = vst.msk [vmem:[%s103 + $0x3a] sm:$0x1] %vm109, %v399
      %s401 = sadd.s32 %s105, 59
      %s402 = sld [smem:[#allocation3 + %s401]]
      %s403 = scalar_lea.vmem %s1, %s402
      %v404 = vld [vmem:[%s403] sm:$0x1]
      %405 = vst.msk [vmem:[%s103 + $0x3b] sm:$0x1] %vm109, %v404
      %s406 = sadd.s32 %s105, 60
      %s407 = sld [smem:[#allocation3 + %s406]]
      %s408 = scalar_lea.vmem %s1, %s407
      %v409 = vld [vmem:[%s408] sm:$0x1]
      %410 = vst.msk [vmem:[%s103 + $0x3c] sm:$0x1] %vm109, %v409
      %s411 = sadd.s32 %s105, 61
      %s412 = sld [smem:[#allocation3 + %s411]]
      %s413 = scalar_lea.vmem %s1, %s412
      %v414 = vld [vmem:[%s413] sm:$0x1]
      %415 = vst.msk [vmem:[%s103 + $0x3d] sm:$0x1] %vm109, %v414
      %s416 = sadd.s32 %s105, 62
      %s417 = sld [smem:[#allocation3 + %s416]]
      %s418 = scalar_lea.vmem %s1, %s417
      %v419 = vld [vmem:[%s418] sm:$0x1]
      %420 = vst.msk [vmem:[%s103 + $0x3e] sm:$0x1] %vm109, %v419
      %s421 = sadd.s32 %s105, 63
      %s422 = sld [smem:[#allocation3 + %s421]]
      %s423 = scalar_lea.vmem %s1, %s422
      %v424 = vld [vmem:[%s423] sm:$0x1]
      %425 = vst.msk [vmem:[%s103 + $0x3f] sm:$0x1] %vm109, %v424
      %s426 = smul.u32 8, %s19
      %p427 = scmp.lt.s32.totalorder %s426, 15
      %s428 = scalar_select %p427, %s426, 15
      %s429 = smul.addr %s428, 8
      %s430 = scalar_lea.vmem %s2, %s429
      // Predicated region
      $region25: #{tpu_custom_call.1} parent=23 // pred_check
        %p431 = pneg %p58
      $region26: #{tpu_custom_call.1} parent=23 // pred_check_branch
        %433 = sbr.rel (%p431) target = $region28
      $region27: #{tpu_custom_call.1} parent=23 // pred_region
        %s434 = smul.u32 8, %s19
      $region28: #{tpu_custom_call.1} parent=23 // pred_fallthru
        _
    $region24: #{tpu_custom_call.1} parent=5 // pred_fallthru
      _
    %p435 = scmp.le.s32.totalorder 2, %s14
    // Predicated region
    $region29: #{tpu_custom_call.1} parent=5 // pred_check
      %p436 = pneg %p435
    $region30: #{tpu_custom_call.1} parent=5 // pred_check_branch
      %438 = sbr.rel (%p436) target = $region32
    $region31: #{tpu_custom_call.1} parent=5 // pred_region
      %s439 = ssub.s32 %s14, 2
      // Predicated region
      $region33: #{tpu_custom_call.1} parent=31 // pred_check
        %p440 = pneg %p64
      $region34: #{tpu_custom_call.1} parent=31 // pred_check_branch
        %442 = sbr.rel (%p440) target = $region36
      $region35: #{tpu_custom_call.1} parent=31 // pred_region
        %s443 = smul.u32 8, %s20
        %p444 = scmp.lt.s32.totalorder %s443, 15
        %s445 = scalar_select %p444, %s443, 15
        %s446 = smul.addr %s445, 8
        %s447 = scalar_lea.vmem %s2, %s446
      $region36: #{tpu_custom_call.1} parent=31 // pred_fallthru
        _
    $region32: #{tpu_custom_call.1} parent=5 // pred_fallthru
      _
  $region6: #{tpu_custom_call.1} parent=0 // loop_footer
    %s18 = sadd.s32 1, %s14
  $region7: #{tpu_custom_call.1} parent=0 // loop_footer_branch
    %13 = sbr.rel target = $region3
  $region8: #{tpu_custom_call.1} parent=0 // loop_exit
    _

</llo_original>
